<compile_context>
chip_gen: v7x
topology: tpu7x:2x2x1
jax: 0.10.0
libtpu: 0.0.40
codegen_flags: <defaults>
</compile_context>

<pallas_src>
import jax
import jax.numpy as jnp
from jax.experimental import pallas as pl
from jax.experimental.pallas import tpu as pltpu


# ---------------------------------------------------------------------------
# Kernel 1: hoisted token MLPs
#   bgpt[b, :] = token_features[b] @ [Wbg_0 | Wpt_0 | Wbg_1 | Wpt_1 | ...] + b
# One matmul for all boxes (all images) and all FPN levels.
# ---------------------------------------------------------------------------
def _token_mlp_kernel(tok_ref, w_ref, b_ref, o_ref):
    o_ref[...] = (jnp.dot(tok_ref[...], w_ref[...],
                          preferred_element_type=jnp.float32) + b_ref[...])


def token_mlps(token_features, w_cat, b_cat):
    b_total = token_features.shape[0]
    cout = w_cat.shape[1]
    return pl.pallas_call(
        _token_mlp_kernel,
        out_shape=jax.ShapeDtypeStruct((b_total, cout), jnp.float32),
    )(token_features, w_cat, b_cat.reshape(1, cout))


# ---------------------------------------------------------------------------
# Kernel 2: fused per-level, per-box kernel
#   box_feat[C,S] = feat[img_b] + bg_b + onehot(pos_b) * pt_b     (VMEM only)
#   p[ch,S]       = W_lat^T @ box_feat + b_lat  (+ p_coarse[b] @ U)
#   logit[1,S]    = sum_c w_logit[c] * p[c,:] + b_logit
# ---------------------------------------------------------------------------
def _make_level_kernel(has_residual, f_in):
    def _body(pos_ref, feat, bgpt, wlat, blat, wlog, blog, resid,
              p_out_ref, logit_ref):
        b = pl.program_id(0)
        s = feat.shape[1]
        bg_col = bgpt[:f_in, :]                                      # (F, 1)
        pt_col = bgpt[f_in:, :]                                      # (F, 1)
        lane = jax.lax.broadcasted_iota(jnp.int32, (1, s), 1)
        point_mask = (lane == pos_ref[b]).astype(jnp.float32)        # (1, S)
        box_feat = feat + bg_col + pt_col * point_mask               # (F, S)
        p = jnp.dot(wlat, box_feat,
                    preferred_element_type=jnp.float32) + blat       # (ch, S)
        if resid is not None:
            p = p + resid
        p_out_ref[...] = p[None]
        logit = jnp.sum(p * wlog, axis=0, keepdims=True) + blog      # (1, S)
        logit_ref[...] = logit[None]

    if has_residual:
        def kernel(pos_ref, img_ref, feat_ref, bgpt_ref, wlat_ref, blat_ref,
                   wlog_ref, blog_ref, pnext_ref, ups_ref,
                   p_out_ref, logit_ref):
            # nearest-neighbour upsample fused as a one-hot matmul in VMEM
            resid = jnp.dot(pnext_ref[0], ups_ref[...],
                            preferred_element_type=jnp.float32)
            _body(pos_ref, feat_ref[0], bgpt_ref[0], wlat_ref[...],
                  blat_ref[...], wlog_ref[...], blog_ref[...], resid,
                  p_out_ref, logit_ref)
    else:
        def kernel(pos_ref, img_ref, feat_ref, bgpt_ref, wlat_ref, blat_ref,
                   wlog_ref, blog_ref, p_out_ref, logit_ref):
            _body(pos_ref, feat_ref[0], bgpt_ref[0], wlat_ref[...],
                  blat_ref[...], wlog_ref[...], blog_ref[...], None,
                  p_out_ref, logit_ref)
    return kernel


def fused_box_level(feat, bgpt, pos, img_id, wlat_t, blat, wlog, blog,
                    p_next=None, up_mat=None):
    """feat [N_img, C, S]; bgpt [B, 2C, 1]; pos/img_id int32 [B];
    wlat_t [ch, C]; blat/wlog [ch, 1]; blog [1, 1];
    p_next [B, ch, S_coarse] + up_mat [S_coarse, S] for non-coarsest levels.
    Returns (p [B, ch, S], logits [B, 1, S])."""
    n_img, c_in, s = feat.shape
    b_total = bgpt.shape[0]
    channels = wlat_t.shape[0]
    has_res = p_next is not None

    in_specs = [
        pl.BlockSpec((1, c_in, s), lambda b, pos_r, img_r: (img_r[b], 0, 0)),
        pl.BlockSpec((1, 2 * c_in, 1), lambda b, pos_r, img_r: (b, 0, 0)),
        pl.BlockSpec((channels, c_in), lambda b, pos_r, img_r: (0, 0)),
        pl.BlockSpec((channels, 1), lambda b, pos_r, img_r: (0, 0)),
        pl.BlockSpec((channels, 1), lambda b, pos_r, img_r: (0, 0)),
        pl.BlockSpec((1, 1), lambda b, pos_r, img_r: (0, 0)),
    ]
    args = [feat, bgpt, wlat_t, blat, wlog, blog]
    if has_res:
        s_next = p_next.shape[2]
        in_specs += [
            pl.BlockSpec((1, channels, s_next),
                         lambda b, pos_r, img_r: (b, 0, 0)),
            pl.BlockSpec((s_next, s), lambda b, pos_r, img_r: (0, 0)),
        ]
        args += [p_next, up_mat]

    out_shape = (jax.ShapeDtypeStruct((b_total, channels, s), jnp.float32),
                 jax.ShapeDtypeStruct((b_total, 1, s), jnp.float32))
    out_specs = (pl.BlockSpec((1, channels, s),
                              lambda b, pos_r, img_r: (b, 0, 0)),
                 pl.BlockSpec((1, 1, s),
                              lambda b, pos_r, img_r: (b, 0, 0)))

    grid_spec = pltpu.PrefetchScalarGridSpec(
        num_scalar_prefetch=2,
        grid=(b_total,),
        in_specs=in_specs,
        out_specs=out_specs,
    )
    return pl.pallas_call(
        _make_level_kernel(has_res, c_in),
        out_shape=out_shape,
        grid_spec=grid_spec,
        compiler_params=pltpu.CompilerParams(
            dimension_semantics=("parallel",)),
    )(pos, img_id, *args)


# ---------------------------------------------------------------------------
# glue helpers
# ---------------------------------------------------------------------------
def _upsample_matrix(small, big):
    """One-hot matrix U [s_small, S_big] s.t. fine = coarse @ U (nearest-nb)."""
    d, h, w = small
    D, H, W = big
    x = jnp.arange(D, dtype=jnp.int32) // (D // d)
    y = jnp.arange(H, dtype=jnp.int32) // (H // h)
    z = jnp.arange(W, dtype=jnp.int32) // (W // w)
    src = (x[:, None, None] * (h * w) + y[None, :, None] * w
           + z[None, None, :]).reshape(-1)                      # [S_big]
    return (jnp.arange(d * h * w, dtype=jnp.int32)[:, None]
            == src[None, :]).astype(jnp.float32)


# ---------------------------------------------------------------------------
# Synthetic FPN decoder + MaskHead parameters
# ---------------------------------------------------------------------------
class FPNDecoderParams:
    def __init__(self, key, feature_channels, channels):
        self.feature_channels = list(feature_channels)   # bottom-up order
        self.channels = channels
        self.lateral_w, self.lateral_b = [], []
        for fc in self.feature_channels:
            key, k1, k2 = jax.random.split(key, 3)
            self.lateral_w.append(
                0.01 * jax.random.normal(k1, (fc, channels), jnp.float32))
            self.lateral_b.append(
                0.01 * jax.random.normal(k2, (channels,), jnp.float32))


class MaskHeadParams:
    def __init__(self, key, decoder, token_feature_dim):
        self.decoder = decoder
        self.token_feature_dim = token_feature_dim
        self.point_w, self.point_b = [], []
        self.bg_w, self.bg_b = [], []
        for fc in decoder.feature_channels:
            key, k1, k2, k3, k4 = jax.random.split(key, 5)
            self.point_w.append(
                0.01 * jax.random.normal(k1, (token_feature_dim, fc), jnp.float32))
            self.point_b.append(0.01 * jax.random.normal(k2, (fc,), jnp.float32))
            self.bg_w.append(
                0.01 * jax.random.normal(k3, (token_feature_dim, fc), jnp.float32))
            self.bg_b.append(0.01 * jax.random.normal(k4, (fc,), jnp.float32))
        key, k1, k2 = jax.random.split(key, 3)
        self.logits_w = 0.01 * jax.random.normal(k1, (decoder.channels, 1), jnp.float32)
        self.logits_b = 0.01 * jax.random.normal(k2, (1,), jnp.float32)


# ---------------------------------------------------------------------------
# MaskHead forward
# ---------------------------------------------------------------------------
def mask_head_forward(head, multi_scale_features, tokens_list,
                      token_features_list, return_aux=False):
    num_images = len(tokens_list)
    assert multi_scale_features[0].shape[0] == num_images
    msf_bu = multi_scale_features[::-1]              # top-down -> bottom-up
    L = len(msf_bu)
    shapes = [tuple(f.shape[2:]) for f in msf_bu]    # (D, H, W) per level
    D0, H0, W0 = shapes[0]
    nboxes = [int(t.shape[0]) for t in tokens_list]
    b_total = int(sum(nboxes))

    if b_total == 0:
        out_masks = [jnp.zeros((0, D0, H0, W0), jnp.float32)
                     for _ in range(num_images)]
        if return_aux:
            aux = [[jnp.zeros((0,) + shapes[L - 1 - k], jnp.float32)
                    for k in range(L - 1)] for _ in range(num_images)]
            return out_masks, aux
        return out_masks, None

    # --- batch boxes of all images into one grid (amortize kernel launches)
    tokens_all = jnp.concatenate(tokens_list, axis=0).astype(jnp.int32)
    tokf_all = jnp.concatenate(token_features_list, axis=0).astype(jnp.float32)
    img_id = jnp.concatenate(
        [jnp.full((nb,), i, jnp.int32) for i, nb in enumerate(nboxes)], axis=0)

    # --- hoisted token MLPs: one matmul for every level, bg|pt stacked
    w_cat = jnp.concatenate(
        [jnp.concatenate([head.bg_w[l], head.point_w[l]], axis=1)
         for l in range(L)], axis=1)
    b_cat = jnp.concatenate(
        [jnp.concatenate([head.bg_b[l], head.point_b[l]], axis=0)
         for l in range(L)], axis=0)
    bgpt_all = token_mlps(tokf_all, w_cat, b_cat)    # [B, sum(2*F_l)]

    # channels-first, spatially-flattened features [N_img, C_l, S_l]
    feats_flat = [f.reshape(f.shape[0], f.shape[1], -1).astype(jnp.float32)
                  for f in msf_bu]
    offs, o = [], 0
    for l in range(L):
        offs.append(o)
        o += 2 * msf_bu[l].shape[1]

    wlog = head.logits_w.reshape(-1, 1)
    blog = head.logits_b.reshape(1, 1)

    # --- top-down pass: fused box-features + lateral conv (+ residual) + logits
    p = None
    masks_td = []                                    # coarsest -> finest
    for lvl in reversed(range(L)):
        f_l = msf_bu[lvl].shape[1]
        D, H, W = shapes[lvl]
        xs = tokens_all[:, 0] // (D0 // D)           # trunc == floor (non-neg)
        ys = tokens_all[:, 1] // (H0 // H)
        zs = tokens_all[:, 2] // (W0 // W)
        pos = (xs * (H * W) + ys * W + zs).astype(jnp.int32)
        bgpt_l = bgpt_all[:, offs[lvl]:offs[lvl] + 2 * f_l]
        bgpt_l = bgpt_l.reshape(b_total, 2 * f_l, 1)
        wlat_t = head.decoder.lateral_w[lvl].T       # [channels, F_l]
        blat = head.decoder.lateral_b[lvl].reshape(-1, 1)
        if p is None:
            p, logit = fused_box_level(feats_flat[lvl], bgpt_l, pos, img_id,
                                       wlat_t, blat, wlog, blog)
        else:
            up_mat = _upsample_matrix(shapes[lvl + 1], shapes[lvl])
            p, logit = fused_box_level(feats_flat[lvl], bgpt_l, pos, img_id,
                                       wlat_t, blat, wlog, blog,
                                       p_next=p, up_mat=up_mat)
        masks_td.append(logit.reshape(b_total, D, H, W))

    # --- split back per image
    starts = [0]
    for nb in nboxes:
        starts.append(starts[-1] + nb)
    out_masks = [masks_td[-1][starts[i]:starts[i + 1]]
                 for i in range(num_images)]
    aux = None
    if return_aux:
        aux = [[m[starts[i]:starts[i + 1]] for m in masks_td[:-1]]
               for i in range(num_images)]
    return out_masks, aux


# ---------------------------------------------------------------------------
# Pure-JAX (NCDHW) reference for verification: returns all top-down masks
# ---------------------------------------------------------------------------
def _ref_predict_all(head, ms_feats_bu, tokens, tok_feats):
    shapes = [f.shape[1:] for f in ms_feats_bu]
    D0, H0, W0 = shapes[0]
    nbox = tokens.shape[0]
    bu = []
    for lvl, feat in enumerate(ms_feats_bu):
        F, D, H, W = feat.shape
        xs = tokens[:, 0] // (D0 // D)
        ys = tokens[:, 1] // (H0 // H)
        zs = tokens[:, 2] // (W0 // W)
        bg = tok_feats @ head.bg_w[lvl] + head.bg_b[lvl]
        pt = tok_feats @ head.point_w[lvl] + head.point_b[lvl]
        box = jnp.broadcast_to(bg[:, :, None, None, None], (nbox, F, D, H, W))
        box = box.at[jnp.arange(nbox), :, xs, ys, zs].add(pt)
        bu.append(feat[None] + box)
    p, masks = None, []
    L = len(bu)
    for lvl in reversed(range(L)):
        lat = (jnp.einsum('nfdhw,fc->ncdhw', bu[lvl], head.decoder.lateral_w[lvl])
               + head.decoder.lateral_b[lvl][None, :, None, None, None])
        if p is not None:
            D, H, W = shapes[lvl]
            d, h, w = shapes[lvl + 1]
            up = jnp.repeat(jnp.repeat(jnp.repeat(p, D // d, 2), H // h, 3),
                            W // w, 4)
            lat = lat + up
        p = lat
        m = (jnp.einsum('ncdhw,co->nodhw', p, head.logits_w)
             + head.logits_b[None, :, None, None, None])[:, 0]
        masks.append(m)
    return masks            # coarsest -> finest, [-1] is the full-res mask


# ---------------------------------------------------------------------------
if __name__ == "__main__":
    key = jax.random.PRNGKey(0)

    feature_channels = [8, 16]        # bottom-up (largest spatial -> smallest)
    decoder_channels = 16
    token_feature_dim = 32
    num_images = 2
    nbox = 4
    spatial_bu = [(8, 8, 8), (4, 4, 4)]

    key, kd, kh = jax.random.split(key, 3)
    decoder = FPNDecoderParams(kd, feature_channels, decoder_channels)
    head = MaskHeadParams(kh, decoder, token_feature_dim)

    # multi_scale_features: Top-Down list of [N, F, D, H, W]
    msf = []
    for fc, (D, H, W) in list(zip(feature_channels, spatial_bu))[::-1]:
        key, k = jax.random.split(key)
        msf.append(jax.random.normal(k, (num_images, fc, D, H, W), jnp.float32))

    tokens_list, token_features_list = [], []
    D0, H0, W0 = spatial_bu[0]
    for i in range(num_images):
        key, k1, k2 = jax.random.split(key, 3)
        xyz = jax.random.randint(k1, (nbox, 3), 0, D0, dtype=jnp.int32)
        idx = jnp.full((nbox, 1), i, dtype=jnp.int32)
        tokens_list.append(jnp.concatenate([xyz, idx], axis=1))
        token_features_list.append(
            jax.random.normal(k2, (nbox, token_feature_dim), jnp.float32))

    out_masks, aux_masks = mask_head_forward(
        head, msf, tokens_list, token_features_list, return_aux=True)
    out_masks = [jax.block_until_ready(m) for m in out_masks]
    aux_masks = [[jax.block_until_ready(a) for a in al] for al in aux_masks]

    # verify against pure-JAX reference
    msf_bu = msf[::-1]
    for i in range(num_images):
        per_img = [msf_bu[lvl][i] for lvl in range(len(msf_bu))]
        ref_masks = _ref_predict_all(head, per_img, tokens_list[i],
                                     token_features_list[i])
        assert out_masks[i].shape == (nbox, D0, H0, W0)
        assert jnp.allclose(out_masks[i], ref_masks[-1], rtol=1e-3, atol=1e-3)
        for a, r in zip(aux_masks[i], ref_masks[:-1]):
            assert a.shape == r.shape
            assert jnp.allclose(a, r, rtol=1e-3, atol=1e-3)

    # also exercise the non-aux path
    out_masks2, aux2 = mask_head_forward(
        head, msf, tokens_list, token_features_list, return_aux=False)
    assert aux2 is None
    for m_ref, m2 in zip(out_masks, out_masks2):
        assert jnp.allclose(jax.block_until_ready(m2), m_ref,
                            rtol=1e-3, atol=1e-3)

    print("KERNEL_OK")
</pallas_src>

<mosaic_0001>
module attributes {stable_mosaic.version = 11 : i64} {
  func.func @_token_mlp_kernel(%arg0: memref<8x32xf32, #tpu.memory_space<vmem>>, %arg1: memref<32x48xf32, #tpu.memory_space<vmem>>, %arg2: memref<1x48xf32, #tpu.memory_space<vmem>>, %arg3: memref<8x48xf32, #tpu.memory_space<vmem>>) attributes {dimension_semantics = [], scalar_prefetch = 0 : i64, scratch_operands = 0 : i64, tpu.core_type = #tpu.core_type<tc>} {
    %c0 = arith.constant 0 : index
    %c0_0 = arith.constant 0 : index
    %0 = vector.load %arg0[%c0, %c0_0] : memref<8x32xf32, #tpu.memory_space<vmem>>, vector<8x32xf32>
    %c0_1 = arith.constant 0 : index
    %c0_2 = arith.constant 0 : index
    %1 = vector.load %arg1[%c0_1, %c0_2] : memref<32x48xf32, #tpu.memory_space<vmem>>, vector<32x48xf32>
    %cst = arith.constant dense<0.000000e+00> : vector<8x48xf32>
    %2 = tpu.matmul %0, %1, %cst {dimension_numbers = #tpu.dot_dimension_numbers<[1], [0], [0], [1], [0, 0, 1, 1], [], []>} : vector<8x32xf32>, vector<32x48xf32>, vector<8x48xf32> -> vector<8x48xf32>
    %c0_3 = arith.constant 0 : index
    %c0_4 = arith.constant 0 : index
    %3 = vector.load %arg2[%c0_3, %c0_4] : memref<1x48xf32, #tpu.memory_space<vmem>>, vector<1x48xf32>
    %4 = vector.broadcast %3 : vector<1x48xf32> to vector<8x48xf32>
    %5 = arith.addf %2, %4 : vector<8x48xf32>
    %c0_5 = arith.constant 0 : index
    %c0_6 = arith.constant 0 : index
    %6 = vector.load %arg3[%c0_5, %c0_6] : memref<8x48xf32, #tpu.memory_space<vmem>>, vector<8x48xf32>
    tpu.vector_store %arg3[%c0_5, %c0_6], %5 {strides = array<i32>} : memref<8x48xf32, #tpu.memory_space<vmem>>, vector<8x48xf32>,
    return
  }
}

</mosaic_0001>

<llo_original>
// kernel: tpu_custom_call.1
$region0: #{tpu_custom_call.1}
  #allocation0 [shape = 'u32[]', space=smem, size = 0x4, offset = 0x4, fixed_abs, tag = 'smem constant byte address 0x4 - core index']
  #allocation1 [shape = 'u32[144,128]{1,0:T(1,128)}', space=vmem, size = 0x12000, scoped, tag = 'internal scratch']
  %s0 = inlined_call_operand.hbm [shape: f32[8,32], index: 0, kind: input, shape index: {}]
  %s1 = inlined_call_operand.hbm [shape: f32[32,48], index: 1, kind: input, shape index: {}]
  %s2 = inlined_call_operand.vmem [shape: f32[1,48], index: 2, kind: input, shape index: {}]
  %s3 = inlined_call_operand.hbm [shape: f32[8,48], index: 3, kind: output, shape index: {}]
  %s4 = sld [smem:[#allocation0]]
  $region30: #{tpu_custom_call.1} parent=0
    _
  %s6 = ssub.s32 1, %s4
  %s7 = scalar_select 0, %s6, %s4
  $region1: #{tpu_custom_call.1} parent=0
    #allocation2 [shape = 'u8[4096]{0}', space=vmem, size = 0x1000, scoped, tag = 'input window, operand 0, single buffered']
    #allocation3 [shape = 's32[1]{0}', space=sflag, size = 0x4, scoped, tag = 'scoped memory for tpu_custom_call.1']
    #allocation4 [shape = 's32[1]{0}', space=sflag, size = 0x4, scoped, tag = 'scoped memory for tpu_custom_call.1']
    #allocation5 [shape = 'u8[16384]{0}', space=vmem, size = 0x4000, scoped, tag = 'input window, operand 1, single buffered']
    #allocation6 [shape = 's32[1]{0}', space=sflag, size = 0x4, scoped, tag = 'scoped memory for tpu_custom_call.1']
    #allocation7 [shape = 'u8[4096]{0}', space=vmem, size = 0x1000, scoped, tag = 'output window, operand 0, single buffered']
    %8 = vsyncpa [#allocation3], 0
    %9 = vsyncpa [#allocation6], 0
    %10 = vsyncpa [#allocation4], 0
    // Predicated region
    $region2: #{tpu_custom_call.1} parent=1 // pred_check
      _
    $region3: #{tpu_custom_call.1} parent=1 // pred_check_branch
      %12 = sbr.rel (0) target = $region5
    $region4: #{tpu_custom_call.1} parent=1 // pred_region
      %s14 = ssub.s32 128, 128
      %15 = vsyncadd [#allocation3], %s14
      %s17 = sshll.u32 [#allocation2], 4
      %s18 = int_to_ptr.vmem [resolvable:$true] %s17
      %20 = dma.hbm_to_vmem [thread:$0]  %s0, 128, %s18, [#allocation3]
    $region5: #{tpu_custom_call.1} parent=1 // pred_fallthru
      _
    // Predicated region
    $region6: #{tpu_custom_call.1} parent=1 // pred_check
      _
    $region7: #{tpu_custom_call.1} parent=1 // pred_check_branch
      %22 = sbr.rel (0) target = $region9
    $region8: #{tpu_custom_call.1} parent=1 // pred_region
      %s24 = ssub.s32 512, 512
      %25 = vsyncadd [#allocation6], %s24
      %s26 = sshll.u32 [#allocation5], 4
      %s27 = int_to_ptr.vmem [resolvable:$true] %s26
      %32 = dma.hbm_to_vmem [thread:$0]  %s1, 512, %s27, [#allocation6], 128, 128, 8
    $region9: #{tpu_custom_call.1} parent=1 // pred_fallthru
      _
    // Predicated region
    $region10: #{tpu_custom_call.1} parent=1 // pred_check
      _
    $region11: #{tpu_custom_call.1} parent=1 // pred_check_branch
      %34 = sbr.rel (0) target = $region13
    $region12: #{tpu_custom_call.1} parent=1 // pred_region
      _
    $region13: #{tpu_custom_call.1} parent=1 // pred_fallthru
      _
    // Predicated region
    $region14: #{tpu_custom_call.1} parent=1 // pred_check
      _
    $region15: #{tpu_custom_call.1} parent=1 // pred_check_branch
      %36 = sbr.rel (0) target = $region17
    $region16: #{tpu_custom_call.1} parent=1 // pred_region
      %37 = dma.done [#allocation3], 128
    $region17: #{tpu_custom_call.1} parent=1 // pred_fallthru
      _
    // Predicated region
    $region18: #{tpu_custom_call.1} parent=1 // pred_check
      _
    $region19: #{tpu_custom_call.1} parent=1 // pred_check_branch
      %39 = sbr.rel (0) target = $region21
    $region20: #{tpu_custom_call.1} parent=1 // pred_region
      %40 = dma.done [#allocation6], 512
    $region21: #{tpu_custom_call.1} parent=1 // pred_fallthru
      _
    %v41 = vld [vmem:[#allocation2] sm:$0xff]
    %v42 = vld [vmem:[#allocation5] sm:$0xff]
    %v43 = vld [vmem:[#allocation5 + $0x8] sm:$0xff]
    %v44 = vld [vmem:[#allocation5 + $0x10] sm:$0xff]
    %v45 = vld [vmem:[#allocation5 + $0x18] sm:$0xff]
    %v46 = vld [vmem:[%s2] sm:$0x1]
    %v48 = vlaneseq
    %v49 = vshrl.u32 %v48, 7
    %v50 = vsub.s32 0, %v49
    %v51 = vrot.slane %v46, %v50
    %vm53 = vcmask 261120
    %v55 = vsel %vm53, %v41, 0
    %57 = vmatprep.subr.mxu0 0.0
    %58 = vmatpush1.msra.mxu0 %v42
    %59 = vmatprep.subr.mxu0 0.0
    %60 = vmatpush1.msra.mxu0 %v43
    %61 = vmatprep.subr.mxu0 0.0
    %62 = vmatpush1.msra.mxu0 %v44
    %63 = vmatprep.subr.mxu0 0.0
    %64 = vmatpush1.msra.mxu0 %v45
    %65 = vmatprep.subr.mxu0 0.0
    %66 = vmatpush1.msra.mxu0 0.0
    %67 = vmatprep.subr.mxu0 0.0
    %68 = vmatpush1.msra.mxu0 0.0
    %69 = vmatprep.subr.mxu0 0.0
    %70 = vmatpush1.msra.mxu0 0.0
    %71 = vmatprep.subr.mxu0 0.0
    %72 = vmatpush1.msra.mxu0 0.0
    %73 = vmatprep.subr.mxu0 0.0
    %74 = vmatpush1.msra.mxu0 0.0
    %75 = vmatprep.subr.mxu0 0.0
    %76 = vmatpush1.msra.mxu0 0.0
    %77 = vmatprep.subr.mxu0 0.0
    %78 = vmatpush1.msra.mxu0 0.0
    %79 = vmatprep.subr.mxu0 0.0
    %80 = vmatpush1.msra.mxu0 0.0
    %81 = vmatprep.subr.mxu0 0.0
    %82 = vmatpush1.msra.mxu0 0.0
    %83 = vmatprep.subr.mxu0 0.0
    %84 = vmatpush1.msra.mxu0 0.0
    %85 = vmatprep.subr.mxu0 0.0
    %86 = vmatpush1.msra.mxu0 0.0
    %87 = vmatprep.subr.mxu0 0.0
    %88 = vmatpush1.msra.mxu0 0.0
    %89 = vmatprep.subr.mxu0 0.0
    %90 = vmatpush1.msra.mxu0 0.0
    %91 = vmatprep.subr.mxu0 0.0
    %92 = vmatpush1.msra.mxu0 0.0
    %93 = vmatprep.subr.mxu0 0.0
    %94 = vmatpush1.msra.mxu0 0.0
    %95 = vmatprep.subr.mxu0 0.0
    %96 = vmatpush1.msra.mxu0 0.0
    %97 = vmatprep.subr.mxu0 0.0
    %98 = vmatpush1.msra.mxu0 0.0
    %99 = vmatprep.subr.mxu0 0.0
    %100 = vmatpush1.msra.mxu0 0.0
    %101 = vmatprep.subr.mxu0 0.0
    %102 = vmatpush1.msra.mxu0 0.0
    %103 = vmatprep.subr.mxu0 0.0
    %104 = vmatpush1.msra.mxu0 0.0
    %105 = vmatprep.subr.mxu0 0.0
    %106 = vmatpush1.msra.mxu0 0.0
    %107 = vmatprep.subr.mxu0 0.0
    %108 = vmatpush1.msra.mxu0 0.0
    %109 = vmatprep.subr.mxu0 0.0
    %110 = vmatpush1.msra.mxu0 0.0
    %111 = vmatprep.subr.mxu0 0.0
    %112 = vmatpush1.msra.mxu0 0.0
    %113 = vmatprep.subr.mxu0 0.0
    %114 = vmatpush1.msra.mxu0 0.0
    %115 = vmatprep.subr.mxu0 0.0
    %116 = vmatpush1.msra.mxu0 0.0
    %117 = vmatprep.subr.mxu0 0.0
    %118 = vmatpush1.msra.mxu0 0.0
    %119 = vmatprep.subr.mxu0 0.0
    %120 = vmatpush1.msra.mxu0 0.0
    %121 = vmatprep.mubr.f32.mxu0 0.0
    %122 = vmatmul.mubr.f32.gmra.mrb[0].mxu0 %v55
    %v123 = vpop.f32.mrb[0].mxu0
    %v124 = vadd.f32 %v51, %v123
    %v125 = vpop.f32.mrb[0].mxu0
    %126 = vdwg.mxu0
    %vm127 = vcmask 392192
    %128 = vst.msk [vmem:[#allocation7] sm:$0xff] %vm127, %v124
    // Predicated region
    $region22: #{tpu_custom_call.1} parent=1 // pred_check
      _
    $region23: #{tpu_custom_call.1} parent=1 // pred_check_branch
      %130 = sbr.rel (0) target = $region25
    $region24: #{tpu_custom_call.1} parent=1 // pred_region
      %s132 = ssub.s32 128, 128
      %133 = vsyncadd [#allocation4], %s132
      %s135 = sshll.u32 [#allocation7], 4
      %s136 = int_to_ptr.vmem [resolvable:$true] %s135
      %138 = dma.vmem_to_hbm [thread:$0]  %s136, 128, %s3, [#allocation4]
    $region25: #{tpu_custom_call.1} parent=1 // pred_fallthru
      _
    // Predicated region
    $region26: #{tpu_custom_call.1} parent=1 // pred_check
      _
    $region27: #{tpu_custom_call.1} parent=1 // pred_check_branch
      %140 = sbr.rel (0) target = $region29
    $region28: #{tpu_custom_call.1} parent=1 // pred_region
      %141 = dma.done [#allocation4], 128
    $region29: #{tpu_custom_call.1} parent=1 // pred_fallthru
      _
    %142 = vsyncpa [#allocation3], 1
    %143 = vsyncpa [#allocation6], 1
    %144 = vsyncpa [#allocation4], 1

</llo_original>
